<compile_context>
chip_gen: v6e
topology: v6e:2x2x1
jax: 0.10.0
libtpu: 0.0.40
codegen_flags: <defaults>
</compile_context>

<pallas_src>
import math

import jax
import jax.numpy as jnp
from jax.experimental import pallas as pl
from jax.experimental.pallas import tpu as pltpu


# ---------------------------------------------------------------------------
# Helpers
# ---------------------------------------------------------------------------

def _round_up(n, m):
    return max(m, ((n + m - 1) // m) * m)


def _pad_to(a, shape):
    pads = [(0, t - s) for s, t in zip(a.shape, shape)]
    return jnp.pad(a, pads)


def _pick_tile_n(Hp, cap=1024):
    """Largest of {1024,512,256,128} dividing Hp; prefer >=2 N tiles when
    Hp >= 256 so the 'parallel' axis can be megacore-sharded on v7x."""
    cands = [t for t in (1024, 512, 256, 128) if t <= cap and Hp % t == 0]
    if not cands:
        return Hp
    multi = [t for t in cands if Hp // t >= 2]
    if Hp >= 256 and multi:
        return multi[0]
    return cands[0]


# ---------------------------------------------------------------------------
# One-time parameter packing (hoisted out of the per-step path)
# ---------------------------------------------------------------------------

def prepare_rnncell_params(w_ih, w_hh, b_ih, b_hh):
    """Pack PyTorch-layout RNNCell params for the kernels.

    w_ih: (H, I), w_hh: (H, H), b_ih/b_hh: (H,)  (all f32, PyTorch layout)
    Returns:
      w_ih_p: (Ip, Hp) bf16  -- W_ih^T, zero-padded
      w_hh_p: (Hp, Hp) bf16  -- W_hh^T, zero-padded
      b_p:    (1, Hp)  f32   -- b_ih + b_hh, zero-padded
    """
    H, I = w_ih.shape
    Ip, Hp = _round_up(I, 128), _round_up(H, 128)
    w_ih_p = _pad_to(jnp.transpose(w_ih).astype(jnp.float32), (Ip, Hp)).astype(jnp.bfloat16)
    w_hh_p = _pad_to(jnp.transpose(w_hh).astype(jnp.float32), (Hp, Hp)).astype(jnp.bfloat16)
    b_p = _pad_to((b_ih + b_hh).astype(jnp.float32)[None, :], (1, Hp))
    # TODO(synk): on v7x, optionally store weights as fp8 + per-output-channel
    # scale applied in the f32 epilogue for another ~2x on the weight roofline.
    return w_ih_p, w_hh_p, b_p


# ---------------------------------------------------------------------------
# Single-step kernel (Model.forward equivalent)
# ---------------------------------------------------------------------------

def _rnncell_step_kernel(x_ref, h_ref, w_ih_ref, w_hh_ref, b_ref, out_ref):
    # x_ref: (Bp, Ip) bf16, h_ref: (Bp, Hp) bf16
    # w_ih_ref: (Ip, tn) bf16, w_hh_ref: (Hp, tn) bf16, b_ref: (1, tn) f32
    pre = jnp.dot(x_ref[...], w_ih_ref[...], preferred_element_type=jnp.float32)
    pre += jnp.dot(h_ref[...], w_hh_ref[...], preferred_element_type=jnp.float32)
    out_ref[...] = jnp.tanh(pre + b_ref[...]).astype(out_ref.dtype)


def _rnncell_step_padded(x_p, h_p, w_ih_p, w_hh_p, b_p):
    Bp, Ip = x_p.shape
    Hp = h_p.shape[1]
    tn = _pick_tile_n(Hp)
    # TODO(synk): for very large Ip/Hp add a K grid axis (accumulator scratch)
    # to bound the per-block weight footprint; not needed at these cell sizes.
    return pl.pallas_call(
        _rnncell_step_kernel,
        out_shape=jax.ShapeDtypeStruct((Bp, Hp), jnp.float32),
        grid_spec=pltpu.PrefetchScalarGridSpec(
            num_scalar_prefetch=0,
            grid=(Hp // tn,),
            in_specs=[
                pl.BlockSpec((Bp, Ip), lambda j: (0, 0)),   # x   (resident)
                pl.BlockSpec((Bp, Hp), lambda j: (0, 0)),   # h   (resident)
                pl.BlockSpec((Ip, tn), lambda j: (0, j)),   # W_ih^T N-tile
                pl.BlockSpec((Hp, tn), lambda j: (0, j)),   # W_hh^T N-tile
                pl.BlockSpec((1, tn), lambda j: (0, j)),    # bias N-tile
            ],
            out_specs=pl.BlockSpec((Bp, tn), lambda j: (0, j)),
        ),
        compiler_params=pltpu.CompilerParams(
            dimension_semantics=("parallel",),     # N tiles independent (megacore)
            vmem_limit_bytes=64 * 1024 * 1024,
        ),
    )(x_p, h_p, w_ih_p, w_hh_p, b_p)


@jax.jit
def rnncell_forward(x, h, w_ih_p, w_hh_p, b_p):
    """Single-step RNNCell forward (matches Model.forward). f32 in / f32 out."""
    B, _ = x.shape
    H = h.shape[1]
    Ip = w_ih_p.shape[0]
    Hp = w_hh_p.shape[0]
    Bp = _round_up(B, 16)   # bf16 packs 16 rows per vreg sublane group
    x_p = _pad_to(x.astype(jnp.bfloat16), (Bp, Ip))
    h_p = _pad_to(h.astype(jnp.bfloat16), (Bp, Hp))
    out_p = _rnncell_step_padded(x_p, h_p, w_ih_p, w_hh_p, b_p)
    return out_p[:B, :H]


# ---------------------------------------------------------------------------
# Fused-sequence kernel: T steps in ONE pallas_call, weights VMEM-resident
# ---------------------------------------------------------------------------

def _rnncell_seq_kernel(xs_ref, h0_ref, w_ih_ref, w_hh_ref, b_ref, hs_ref, h_scr):
    # xs_ref:  (1, Bp, Ip) bf16   current timestep input (streamed per t)
    # h0_ref:  (Bp, Hp)    f32    initial hidden (resident)
    # w_*_ref: (Ip/Hp, Hp) bf16   VMEM-resident across all T steps
    # b_ref:   (1, Hp)     f32    resident
    # hs_ref:  (1, Bp, Hp) f32    this timestep's hidden output
    # h_scr:   (Bp, Hp)    f32    hidden carried across grid steps
    t = pl.program_id(0)

    @pl.when(t == 0)
    def _():
        h_scr[...] = h0_ref[...]

    pre = jnp.dot(xs_ref[0], w_ih_ref[...], preferred_element_type=jnp.float32)
    pre += jnp.dot(h_scr[...].astype(jnp.bfloat16), w_hh_ref[...],
                   preferred_element_type=jnp.float32)
    h_new = jnp.tanh(pre + b_ref[...])          # f32 epilogue (v5e-safe)
    h_scr[...] = h_new                          # carry in f32 (no drift beyond MXU cast)
    hs_ref[0] = h_new.astype(hs_ref.dtype)


@jax.jit
def rnncell_sequence(xs, h0, w_ih_p, w_hh_p, b_p):
    """Run the RNNCell over a whole sequence inside one pallas_call.

    xs: (T, B, I) f32, h0: (B, H) f32  ->  (T, B, H) f32 hidden states.
    Weight/bias BlockSpecs return the same block for every t, so they are
    DMA'd into VMEM once and stay resident across all T steps (~T x fewer
    weight HBM bytes than calling the step kernel in a host loop).
    """
    T, B, _ = xs.shape
    H = h0.shape[1]
    Ip = w_ih_p.shape[0]
    Hp = w_hh_p.shape[0]
    Bp = _round_up(B, 16)
    xs_p = _pad_to(xs.astype(jnp.bfloat16), (T, Bp, Ip))   # one-time packing
    h0_p = _pad_to(h0.astype(jnp.float32), (Bp, Hp))
    # TODO(synk): for very large H on v7x (64 MiB VMEM) tile the N axis of the
    # resident weights and parity-swap two hidden scratch buffers per step.
    hs_p = pl.pallas_call(
        _rnncell_seq_kernel,
        out_shape=jax.ShapeDtypeStruct((T, Bp, Hp), jnp.float32),
        grid_spec=pltpu.PrefetchScalarGridSpec(
            num_scalar_prefetch=0,
            grid=(T,),
            in_specs=[
                pl.BlockSpec((1, Bp, Ip), lambda t: (t, 0, 0)),  # x_t streamed
                pl.BlockSpec((Bp, Hp), lambda t: (0, 0)),        # h0 resident
                pl.BlockSpec((Ip, Hp), lambda t: (0, 0)),        # W_ih^T resident
                pl.BlockSpec((Hp, Hp), lambda t: (0, 0)),        # W_hh^T resident
                pl.BlockSpec((1, Hp), lambda t: (0, 0)),         # bias resident
            ],
            out_specs=pl.BlockSpec((1, Bp, Hp), lambda t: (t, 0, 0)),
            scratch_shapes=[pltpu.VMEM((Bp, Hp), jnp.float32)],
        ),
        compiler_params=pltpu.CompilerParams(
            # Steps are sequentially dependent through the hidden scratch.
            dimension_semantics=("arbitrary",),
            vmem_limit_bytes=64 * 1024 * 1024,
        ),
    )(xs_p, h0_p, w_ih_p, w_hh_p, b_p)
    return hs_p[:, :B, :H]


# ---------------------------------------------------------------------------
# Init / references / tests
# ---------------------------------------------------------------------------

def init_rnncell_params(key, input_size, hidden_size):
    """Deterministic init mirroring torch.nn.RNNCell: U(-1/sqrt(H), 1/sqrt(H))."""
    k1, k2, k3, k4 = jax.random.split(key, 4)
    bound = 1.0 / math.sqrt(hidden_size)
    w_ih = jax.random.uniform(k1, (hidden_size, input_size), jnp.float32, -bound, bound)
    w_hh = jax.random.uniform(k2, (hidden_size, hidden_size), jnp.float32, -bound, bound)
    b_ih = jax.random.uniform(k3, (hidden_size,), jnp.float32, -bound, bound)
    b_hh = jax.random.uniform(k4, (hidden_size,), jnp.float32, -bound, bound)
    return w_ih, w_hh, b_ih, b_hh


def _reference_step(x, h, w_ih, w_hh, b_ih, b_hh):
    return jnp.tanh(x @ w_ih.T + b_ih + h @ w_hh.T + b_hh)


def _reference_step_bf16(x, h, w_ih, w_hh, b_ih, b_hh):
    # Mirrors the kernel numerics: bf16 MXU operands, f32 accumulation/epilogue.
    xb, hb = x.astype(jnp.bfloat16), h.astype(jnp.bfloat16)
    wi, wh = w_ih.astype(jnp.bfloat16), w_hh.astype(jnp.bfloat16)
    pre = jnp.dot(xb, wi.T, preferred_element_type=jnp.float32)
    pre += jnp.dot(hb, wh.T, preferred_element_type=jnp.float32)
    return jnp.tanh(pre + (b_ih + b_hh))


if __name__ == "__main__":
    key = jax.random.PRNGKey(0)

    # --- Case 1: exact module shapes (batch=1, input=4, hidden=4) ---
    batch_size, input_size, hidden_size = 1, 4, 4
    kx, kp, krest = jax.random.split(key, 3)
    x = jax.random.normal(kx, (batch_size, input_size), jnp.float32)
    h0 = jnp.zeros((batch_size, hidden_size), jnp.float32)   # Model.init_hidden()
    w_ih, w_hh, b_ih, b_hh = init_rnncell_params(kp, input_size, hidden_size)
    params = prepare_rnncell_params(w_ih, w_hh, b_ih, b_hh)   # one-time packing

    h1 = jax.block_until_ready(rnncell_forward(x, h0, *params))
    ref1 = _reference_step(x, h0, w_ih, w_hh, b_ih, b_hh)
    assert h1.shape == (batch_size, hidden_size)
    assert jnp.allclose(h1, ref1, atol=2e-2, rtol=2e-2), (h1, ref1)

    # --- Case 2: larger cell, exercises the multi-N-tile "parallel" path ---
    B2, I2, H2 = 4, 96, 384
    ka, kb, kc, kd = jax.random.split(krest, 4)
    x2 = jax.random.normal(ka, (B2, I2), jnp.float32)
    h2 = jax.random.normal(kb, (B2, H2), jnp.float32)
    w_ih2, w_hh2, b_ih2, b_hh2 = init_rnncell_params(kc, I2, H2)
    params2 = prepare_rnncell_params(w_ih2, w_hh2, b_ih2, b_hh2)
    out2 = jax.block_until_ready(rnncell_forward(x2, h2, *params2))
    ref2 = _reference_step(x2, h2, w_ih2, w_hh2, b_ih2, b_hh2)
    assert out2.shape == (B2, H2)
    assert jnp.allclose(out2, ref2, atol=2e-2, rtol=2e-2)

    # --- Case 3: fused-sequence kernel (weights VMEM-resident across T) ---
    T3, B3, I3, H3 = 16, 2, 8, 32
    ke, kf = jax.random.split(kd, 2)
    xs3 = jax.random.normal(ke, (T3, B3, I3), jnp.float32)
    h0_3 = jnp.zeros((B3, H3), jnp.float32)
    w_ih3, w_hh3, b_ih3, b_hh3 = init_rnncell_params(kf, I3, H3)
    params3 = prepare_rnncell_params(w_ih3, w_hh3, b_ih3, b_hh3)

    hs3 = jax.block_until_ready(rnncell_sequence(xs3, h0_3, *params3))
    assert hs3.shape == (T3, B3, H3)

    # Step-matched (bf16-operand) reference: tight check of kernel mechanics.
    h_r = h0_3
    refs_bf16 = []
    for t in range(T3):
        h_r = _reference_step_bf16(xs3[t], h_r, w_ih3, w_hh3, b_ih3, b_hh3)
        refs_bf16.append(h_r)
    ref_bf16 = jnp.stack(refs_bf16)
    assert jnp.allclose(hs3, ref_bf16, atol=1e-2, rtol=1e-2)

    # Pure-f32 reference: loose end-to-end drift check over the sequence.
    h_r32 = h0_3
    refs_f32 = []
    for t in range(T3):
        h_r32 = _reference_step(xs3[t], h_r32, w_ih3, w_hh3, b_ih3, b_hh3)
        refs_f32.append(h_r32)
    ref_f32 = jnp.stack(refs_f32)
    assert jnp.allclose(hs3, ref_f32, atol=5e-2, rtol=5e-2)

    print("KERNEL_OK")
</pallas_src>

<mosaic_0001>
module attributes {stable_mosaic.version = 11 : i64} {
  func.func @_rnncell_step_kernel(%arg0: i32, %arg1: memref<16x128xbf16, #tpu.memory_space<vmem>>, %arg2: memref<16x128xbf16, #tpu.memory_space<vmem>>, %arg3: memref<128x128xbf16, #tpu.memory_space<vmem>>, %arg4: memref<128x128xbf16, #tpu.memory_space<vmem>>, %arg5: memref<1x128xf32, #tpu.memory_space<vmem>>, %arg6: memref<16x128xf32, #tpu.memory_space<vmem>>) attributes {dimension_semantics = [#tpu.dimension_semantics<parallel>], iteration_bounds = array<i64: 1>, scalar_prefetch = 0 : i64, scratch_operands = 0 : i64, tpu.core_type = #tpu.core_type<tc>, window_params = [{pipeline_mode = #tpu.pipeline_mode<synchronous>, transform_indices = @transform_0, window_bounds = array<i64: 16, 128>}, {pipeline_mode = #tpu.pipeline_mode<synchronous>, transform_indices = @transform_1, window_bounds = array<i64: 16, 128>}, {transform_indices = @transform_2, window_bounds = array<i64: 128, 128>}, {transform_indices = @transform_3, window_bounds = array<i64: 128, 128>}, {transform_indices = @transform_4, window_bounds = array<i64: 1, 128>}, {transform_indices = @transform_5, window_bounds = array<i64: 16, 128>}]} {
    %c0 = arith.constant 0 : index
    %c0_0 = arith.constant 0 : index
    %0 = vector.load %arg1[%c0, %c0_0] : memref<16x128xbf16, #tpu.memory_space<vmem>>, vector<16x128xbf16>
    %c0_1 = arith.constant 0 : index
    %c0_2 = arith.constant 0 : index
    %1 = vector.load %arg3[%c0_1, %c0_2] : memref<128x128xbf16, #tpu.memory_space<vmem>>, vector<128x128xbf16>
    %cst = arith.constant dense<0.000000e+00> : vector<16x128xf32>
    %2 = tpu.matmul %0, %1, %cst {dimension_numbers = #tpu.dot_dimension_numbers<[1], [0], [0], [1], [0, 0, 1, 1], [], []>} : vector<16x128xbf16>, vector<128x128xbf16>, vector<16x128xf32> -> vector<16x128xf32>
    %c0_3 = arith.constant 0 : index
    %c0_4 = arith.constant 0 : index
    %3 = vector.load %arg2[%c0_3, %c0_4] : memref<16x128xbf16, #tpu.memory_space<vmem>>, vector<16x128xbf16>
    %c0_5 = arith.constant 0 : index
    %c0_6 = arith.constant 0 : index
    %4 = vector.load %arg4[%c0_5, %c0_6] : memref<128x128xbf16, #tpu.memory_space<vmem>>, vector<128x128xbf16>
    %cst_7 = arith.constant dense<0.000000e+00> : vector<16x128xf32>
    %5 = tpu.matmul %3, %4, %cst_7 {dimension_numbers = #tpu.dot_dimension_numbers<[1], [0], [0], [1], [0, 0, 1, 1], [], []>} : vector<16x128xbf16>, vector<128x128xbf16>, vector<16x128xf32> -> vector<16x128xf32>
    %6 = arith.addf %2, %5 : vector<16x128xf32>
    %c0_8 = arith.constant 0 : index
    %c0_9 = arith.constant 0 : index
    %7 = vector.load %arg5[%c0_8, %c0_9] : memref<1x128xf32, #tpu.memory_space<vmem>>, vector<1x128xf32>
    %8 = vector.broadcast %7 : vector<1x128xf32> to vector<16x128xf32>
    %9 = arith.addf %6, %8 : vector<16x128xf32>
    %10 = math.tanh %9 : vector<16x128xf32>
    %c0_10 = arith.constant 0 : index
    %c0_11 = arith.constant 0 : index
    %11 = vector.load %arg6[%c0_10, %c0_11] : memref<16x128xf32, #tpu.memory_space<vmem>>, vector<16x128xf32>
    tpu.vector_store %arg6[%c0_10, %c0_11], %10 {strides = array<i32>} : memref<16x128xf32, #tpu.memory_space<vmem>>, vector<16x128xf32>,
    return
  }
  func.func @transform_0(%arg0: i32) -> (i32, i32) {
    %c0_i32 = arith.constant 0 : i32
    %c0_i32_0 = arith.constant 0 : i32
    %c0_i32_1 = arith.constant 0 : i32
    return %c0_i32, %c0_i32_0 : i32, i32
  }
  func.func @transform_1(%arg0: i32) -> (i32, i32) {
    %c0_i32 = arith.constant 0 : i32
    %c0_i32_0 = arith.constant 0 : i32
    %c0_i32_1 = arith.constant 0 : i32
    return %c0_i32, %c0_i32_0 : i32, i32
  }
  func.func @transform_2(%arg0: i32) -> (i32, i32) {
    %c0_i32 = arith.constant 0 : i32
    %c0_i32_0 = arith.constant 0 : i32
    return %c0_i32, %arg0 : i32, i32
  }
  func.func @transform_3(%arg0: i32) -> (i32, i32) {
    %c0_i32 = arith.constant 0 : i32
    %c0_i32_0 = arith.constant 0 : i32
    return %c0_i32, %arg0 : i32, i32
  }
  func.func @transform_4(%arg0: i32) -> (i32, i32) {
    %c0_i32 = arith.constant 0 : i32
    %c0_i32_0 = arith.constant 0 : i32
    return %c0_i32, %arg0 : i32, i32
  }
  func.func @transform_5(%arg0: i32) -> (i32, i32) {
    %c0_i32 = arith.constant 0 : i32
    %c0_i32_0 = arith.constant 0 : i32
    return %c0_i32, %arg0 : i32, i32
  }
}

</mosaic_0001>

<llo_original>
// kernel: rnncell_forward.1
$region0: #{rnncell_forward.1}
  #allocation0 [shape = 'u32[]', space=smem, size = 0x4, offset = 0x4, fixed_abs, tag = 'smem constant byte address 0x4 - core index']
  #allocation1 [shape = 'u32[144,128]{1,0:T(1,128)}', space=vmem, size = 0x12000, scoped, tag = 'internal scratch']
  %s0 = inlined_call_operand.vmem [shape: bf16[16,128], index: 0, kind: input, shape index: {}]
  %s1 = inlined_call_operand.vmem [shape: bf16[16,128], index: 1, kind: input, shape index: {}]
  %s2 = inlined_call_operand.hbm [shape: bf16[128,128], index: 2, kind: input, shape index: {}]
  %s3 = inlined_call_operand.hbm [shape: bf16[128,128], index: 3, kind: input, shape index: {}]
  %s4 = inlined_call_operand.vmem [shape: f32[1,128], index: 4, kind: input, shape index: {}]
  %s5 = inlined_call_operand.vmem [shape: f32[16,128], index: 5, kind: output, shape index: {}]
  %s6 = sld [smem:[#allocation0]]
  $region38: #{rnncell_forward.1} parent=0
    _
  %s8 = ssub.s32 1, %s6
  %s9 = scalar_select 0, %s8, %s6
  $region1: #{rnncell_forward.1} parent=0
    #allocation2 [shape = 'u8[32768]{0}', space=vmem, size = 0x8000, scoped, tag = 'input window, operand 2, single buffered']
    #allocation3 [shape = 's32[1]{0}', space=sflag, size = 0x4, scoped, tag = 'scoped memory for rnncell_forward.1']
    #allocation4 [shape = 'u8[32768]{0}', space=vmem, size = 0x8000, scoped, tag = 'input window, operand 3, single buffered']
    #allocation5 [shape = 's32[1]{0}', space=sflag, size = 0x4, scoped, tag = 'scoped memory for rnncell_forward.1']
    %10 = vsyncpa [#allocation3], 0
    %11 = vsyncpa [#allocation5], 0
    // Predicated region
    $region2: #{rnncell_forward.1} parent=1 // pred_check
      _
    $region3: #{rnncell_forward.1} parent=1 // pred_check_branch
      %13 = sbr.rel (0) target = $region5
    $region4: #{rnncell_forward.1} parent=1 // pred_region
      _
    $region5: #{rnncell_forward.1} parent=1 // pred_fallthru
      _
    // Predicated region
    $region6: #{rnncell_forward.1} parent=1 // pred_check
      _
    $region7: #{rnncell_forward.1} parent=1 // pred_check_branch
      %15 = sbr.rel (0) target = $region9
    $region8: #{rnncell_forward.1} parent=1 // pred_region
      _
    $region9: #{rnncell_forward.1} parent=1 // pred_fallthru
      _
    // Predicated region
    $region10: #{rnncell_forward.1} parent=1 // pred_check
      _
    $region11: #{rnncell_forward.1} parent=1 // pred_check_branch
      %17 = sbr.rel (0) target = $region13
    $region12: #{rnncell_forward.1} parent=1 // pred_region
      %s19 = ssub.s32 1024, 1024
      %20 = vsyncadd [#allocation3], %s19
      %s21 = sshll.u32 [#allocation2], 4
      %s22 = int_to_ptr.vmem [resolvable:$true] %s21
      %27 = dma.hbm_to_vmem [thread:$0]  %s2, 1024, %s22, [#allocation3], 64, 64, 4
    $region13: #{rnncell_forward.1} parent=1 // pred_fallthru
      _
    // Predicated region
    $region14: #{rnncell_forward.1} parent=1 // pred_check
      _
    $region15: #{rnncell_forward.1} parent=1 // pred_check_branch
      %29 = sbr.rel (0) target = $region17
    $region16: #{rnncell_forward.1} parent=1 // pred_region
      %s31 = ssub.s32 1024, 1024
      %32 = vsyncadd [#allocation5], %s31
      %s33 = sshll.u32 [#allocation4], 4
      %s34 = int_to_ptr.vmem [resolvable:$true] %s33
      %39 = dma.hbm_to_vmem [thread:$0]  %s3, 1024, %s34, [#allocation5], 64, 64, 4
    $region17: #{rnncell_forward.1} parent=1 // pred_fallthru
      _
    // Predicated region
    $region18: #{rnncell_forward.1} parent=1 // pred_check
      _
    $region19: #{rnncell_forward.1} parent=1 // pred_check_branch
      %41 = sbr.rel (0) target = $region21
    $region20: #{rnncell_forward.1} parent=1 // pred_region
      _
    $region21: #{rnncell_forward.1} parent=1 // pred_fallthru
      _
    // Predicated region
    $region22: #{rnncell_forward.1} parent=1 // pred_check
      _
    $region23: #{rnncell_forward.1} parent=1 // pred_check_branch
      %43 = sbr.rel (0) target = $region25
    $region24: #{rnncell_forward.1} parent=1 // pred_region
      %44 = dma.done [#allocation3], 1024
    $region25: #{rnncell_forward.1} parent=1 // pred_fallthru
      _
    // Predicated region
    $region26: #{rnncell_forward.1} parent=1 // pred_check
      _
    $region27: #{rnncell_forward.1} parent=1 // pred_check_branch
      %46 = sbr.rel (0) target = $region29
    $region28: #{rnncell_forward.1} parent=1 // pred_region
      %47 = dma.done [#allocation5], 1024
    $region29: #{rnncell_forward.1} parent=1 // pred_fallthru
      _
    %v49 = vld [vmem:[%s0] sm:$0xf]
    %v50 = vld [vmem:[%s0 + $0x4] sm:$0xf]
    %v51 = vld [vmem:[#allocation2] sm:$0xf]
    %v52 = vld [vmem:[#allocation2 + $0x4] sm:$0xf]
    %v53 = vld [vmem:[#allocation2 + $0x8] sm:$0xf]
    %v54 = vld [vmem:[#allocation2 + $0xc] sm:$0xf]
    %v55 = vld [vmem:[#allocation2 + $0x10] sm:$0xf]
    %v56 = vld [vmem:[#allocation2 + $0x14] sm:$0xf]
    %v57 = vld [vmem:[#allocation2 + $0x18] sm:$0xf]
    %v58 = vld [vmem:[#allocation2 + $0x1c] sm:$0xf]
    %v59 = vld [vmem:[#allocation2 + $0x20] sm:$0xf]
    %v60 = vld [vmem:[#allocation2 + $0x24] sm:$0xf]
    %v61 = vld [vmem:[#allocation2 + $0x28] sm:$0xf]
    %v62 = vld [vmem:[#allocation2 + $0x2c] sm:$0xf]
    %v63 = vld [vmem:[#allocation2 + $0x30] sm:$0xf]
    %v64 = vld [vmem:[#allocation2 + $0x34] sm:$0xf]
    %v65 = vld [vmem:[#allocation2 + $0x38] sm:$0xf]
    %v66 = vld [vmem:[#allocation2 + $0x3c] sm:$0xf]
    %v67 = vld [vmem:[%s1] sm:$0xf]
    %v68 = vld [vmem:[%s1 + $0x4] sm:$0xf]
    %v69 = vld [vmem:[#allocation4] sm:$0xf]
    %v70 = vld [vmem:[#allocation4 + $0x4] sm:$0xf]
    %v71 = vld [vmem:[#allocation4 + $0x8] sm:$0xf]
    %v72 = vld [vmem:[#allocation4 + $0xc] sm:$0xf]
    %v73 = vld [vmem:[#allocation4 + $0x10] sm:$0xf]
    %v74 = vld [vmem:[#allocation4 + $0x14] sm:$0xf]
    %v75 = vld [vmem:[#allocation4 + $0x18] sm:$0xf]
    %v76 = vld [vmem:[#allocation4 + $0x1c] sm:$0xf]
    %v77 = vld [vmem:[#allocation4 + $0x20] sm:$0xf]
    %v78 = vld [vmem:[#allocation4 + $0x24] sm:$0xf]
    %v79 = vld [vmem:[#allocation4 + $0x28] sm:$0xf]
    %v80 = vld [vmem:[#allocation4 + $0x2c] sm:$0xf]
    %v81 = vld [vmem:[#allocation4 + $0x30] sm:$0xf]
    %v82 = vld [vmem:[#allocation4 + $0x34] sm:$0xf]
    %v83 = vld [vmem:[#allocation4 + $0x38] sm:$0xf]
    %v84 = vld [vmem:[#allocation4 + $0x3c] sm:$0xf]
    %v87 = vunpack.c.l.b16 %v67
    %v88 = vunpack.c.l.b16 %v68
    %v89 = vpack.c.b16 %v88, %v87
    %v107 = vunpack.c.l.b16 %v69
    %v108 = vunpack.c.l.b16 %v70
    %v109 = vunpack.c.l.b16 %v71
    %v110 = vunpack.c.l.b16 %v72
    %v111 = vunpack.c.l.b16 %v73
    %v112 = vunpack.c.l.b16 %v74
    %v113 = vunpack.c.l.b16 %v75
    %v114 = vunpack.c.l.b16 %v76
    %v115 = vunpack.c.l.b16 %v77
    %v116 = vunpack.c.l.b16 %v78
    %v117 = vunpack.c.l.b16 %v79
    %v118 = vunpack.c.l.b16 %v80
    %v119 = vunpack.c.l.b16 %v81
    %v120 = vunpack.c.l.b16 %v82
    %v121 = vunpack.c.l.b16 %v83
    %v122 = vunpack.c.l.b16 %v84
    %v123 = vpack.c.b16 %v108, %v107
    %v124 = vpack.c.b16 %v110, %v109
    %v125 = vpack.c.b16 %v112, %v111
    %v126 = vpack.c.b16 %v114, %v113
    %v127 = vpack.c.b16 %v116, %v115
    %v128 = vpack.c.b16 %v118, %v117
    %v129 = vpack.c.b16 %v120, %v119
    %v130 = vpack.c.b16 %v122, %v121
    %139 = vmatprep.subr.bf16.mxu0 0
    %140 = vmatpush1.bf16.msra.mxu0 %v130
    %141 = vmatprep.subr.bf16.mxu0 0
    %142 = vmatpush1.bf16.msra.mxu0 %v129
    %143 = vmatprep.subr.bf16.mxu0 0
    %144 = vmatpush1.bf16.msra.mxu0 %v128
    %145 = vmatprep.subr.bf16.mxu0 0
    %146 = vmatpush1.bf16.msra.mxu0 %v127
    %147 = vmatprep.subr.bf16.mxu0 0
    %148 = vmatpush1.bf16.msra.mxu0 %v126
    %149 = vmatprep.subr.bf16.mxu0 0
    %150 = vmatpush1.bf16.msra.mxu0 %v125
    %151 = vmatprep.subr.bf16.mxu0 0
    %152 = vmatpush1.bf16.msra.mxu0 %v124
    %153 = vmatprep.subr.bf16.mxu0 0
    %154 = vmatpush1.bf16.msra.mxu0 %v123
    %155 = vmatprep.subr.bf16.mxu0 0
    %156 = vmatpush2.bf16.msra.mxu0 0
    %157 = vmatprep.subr.bf16.mxu0 0
    %158 = vmatpush2.bf16.msra.mxu0 0
    %159 = vmatprep.subr.bf16.mxu0 0
    %160 = vmatpush2.bf16.msra.mxu0 0
    %161 = vmatprep.subr.bf16.mxu0 0
    %162 = vmatpush2.bf16.msra.mxu0 0
    %163 = vmatprep.subr.bf16.mxu0 0
    %164 = vmatpush2.bf16.msra.mxu0 0
    %165 = vmatprep.subr.bf16.mxu0 0
    %166 = vmatpush2.bf16.msra.mxu0 0
    %167 = vmatprep.subr.bf16.mxu0 0
    %168 = vmatpush2.bf16.msra.mxu0 0
    %169 = vmatprep.subr.bf16.mxu0 0
    %170 = vmatpush2.bf16.msra.mxu0 0
    %171 = vmatprep.mubr.bf16.mxu0 0
    %172 = vmatmul.mubr.bf16.gmra.mxu0 %v89
    %v173 = vpop.f32.mrf.mxu0
    %v174 = vadd.f32 0.0, %v173
    %v175 = vpop.f32.mrf.mxu0
    %v176 = vpop.f32.mrf.mxu0
    %v177 = vadd.f32 0.0, %v176
    %v178 = vpop.f32.mrf.mxu0
    %179 = vdwg.mxu0
    %v182 = vunpack.c.l.b16 %v49
    %v183 = vunpack.c.l.b16 %v50
    %v184 = vpack.c.b16 %v183, %v182
    %v202 = vunpack.c.l.b16 %v51
    %v203 = vunpack.c.l.b16 %v52
    %v204 = vunpack.c.l.b16 %v53
    %v205 = vunpack.c.l.b16 %v54
    %v206 = vunpack.c.l.b16 %v55
    %v207 = vunpack.c.l.b16 %v56
    %v208 = vunpack.c.l.b16 %v57
    %v209 = vunpack.c.l.b16 %v58
    %v210 = vunpack.c.l.b16 %v59
    %v211 = vunpack.c.l.b16 %v60
    %v212 = vunpack.c.l.b16 %v61
    %v213 = vunpack.c.l.b16 %v62
    %v214 = vunpack.c.l.b16 %v63
    %v215 = vunpack.c.l.b16 %v64
    %v216 = vunpack.c.l.b16 %v65
    %v217 = vunpack.c.l.b16 %v66
    %v218 = vpack.c.b16 %v203, %v202
    %v219 = vpack.c.b16 %v205, %v204
    %v220 = vpack.c.b16 %v207, %v206
    %v221 = vpack.c.b16 %v209, %v208
    %v222 = vpack.c.b16 %v211, %v210
    %v223 = vpack.c.b16 %v213, %v212
    %v224 = vpack.c.b16 %v215, %v214
    %v225 = vpack.c.b16 %v217, %v216
    %234 = vmatprep.subr.bf16.mxu0 0
    %235 = vmatpush1.bf16.msra.mxu0 %v225
    %236 = vmatprep.subr.bf16.mxu0 0
    %237 = vmatpush1.bf16.msra.mxu0 %v224
    %238 = vmatprep.subr.bf16.mxu0 0
    %239 = vmatpush1.bf16.msra.mxu0 %v223
    %240 = vmatprep.subr.bf16.mxu0 0
    %241 = vmatpush1.bf16.msra.mxu0 %v222
    %242 = vmatprep.subr.bf16.mxu0 0
    %243 = vmatpush1.bf16.msra.mxu0 %v221
    %244 = vmatprep.subr.bf16.mxu0 0
    %245 = vmatpush1.bf16.msra.mxu0 %v220
    %246 = vmatprep.subr.bf16.mxu0 0
    %247 = vmatpush1.bf16.msra.mxu0 %v219
    %248 = vmatprep.subr.bf16.mxu0 0
    %249 = vmatpush1.bf16.msra.mxu0 %v218
    %250 = vmatprep.subr.bf16.mxu0 0
    %251 = vmatpush2.bf16.msra.mxu0 0
    %252 = vmatprep.subr.bf16.mxu0 0
    %253 = vmatpush2.bf16.msra.mxu0 0
    %254 = vmatprep.subr.bf16.mxu0 0
    %255 = vmatpush2.bf16.msra.mxu0 0
    %256 = vmatprep.subr.bf16.mxu0 0
    %257 = vmatpush2.bf16.msra.mxu0 0
    %258 = vmatprep.subr.bf16.mxu0 0
    %259 = vmatpush2.bf16.msra.mxu0 0
    %260 = vmatprep.subr.bf16.mxu0 0
    %261 = vmatpush2.bf16.msra.mxu0 0
    %262 = vmatprep.subr.bf16.mxu0 0
    %263 = vmatpush2.bf16.msra.mxu0 0
    %264 = vmatprep.subr.bf16.mxu0 0
    %265 = vmatpush2.bf16.msra.mxu0 0
    %266 = vmatprep.mubr.bf16.mxu0 0
    %267 = vmatmul.mubr.bf16.gmra.mxu0 %v184
    %v268 = vpop.f32.mrf.mxu0
    %v269 = vadd.f32 %v174, %v268
    %v270 = vpop.f32.mrf.mxu0
    %v271 = vpop.f32.mrf.mxu0
    %v272 = vadd.f32 %v177, %v271
    %v273 = vpop.f32.mrf.mxu0
    %274 = vdwg.mxu0
    %v275 = vld [vmem:[%s4] sm:$0x1]
    %v277 = vlaneseq
    %v278 = vshrl.u32 %v277, 7
    %v279 = vsub.s32 0, %v278
    %v280 = vrot.slane %v275, %v279
    %v282 = vadd.f32 %v269, %v280
    %v283 = vadd.f32 %v272, %v280
    %v284 = vtanh.pop %v282
    %v285 = vtanh.pop %v283
    %286 = vst [vmem:[%s5] sm:$0xff] %v284
    %287 = vst [vmem:[%s5 + $0x8] sm:$0xff] %v285
    // Predicated region
    $region30: #{rnncell_forward.1} parent=1 // pred_check
      _
    $region31: #{rnncell_forward.1} parent=1 // pred_check_branch
      %289 = sbr.rel (0) target = $region33
    $region32: #{rnncell_forward.1} parent=1 // pred_region
      _
    $region33: #{rnncell_forward.1} parent=1 // pred_fallthru
      _
    // Predicated region
    $region34: #{rnncell_forward.1} parent=1 // pred_check
      _
    $region35: #{rnncell_forward.1} parent=1 // pred_check_branch
      %291 = sbr.rel (0) target = $region37
    $region36: #{rnncell_forward.1} parent=1 // pred_region
      _
    $region37: #{rnncell_forward.1} parent=1 // pred_fallthru
      _
    %292 = vsyncpa [#allocation3], 1
    %293 = vsyncpa [#allocation5], 1

</llo_original>
